<compile_context>
chip_gen: v7x
topology: tpu7x:2x2x1
jax: 0.10.0
libtpu: 0.0.40
codegen_flags: <defaults>
</compile_context>

<pallas_src>
import functools

import jax
import jax.numpy as jnp
from jax.experimental import pallas as pl
from jax.experimental.pallas import tpu as pltpu


def _detect_vmem_limit():
    """Per-generation scoped-VMEM budget: 75% of physical, capped at 100 MiB,
    with a conservative 48 MiB fallback that is safe on every generation."""
    try:
        phys = int(pltpu.get_tpu_info().vmem_capacity_bytes)
        return min((phys * 3) // 4, 100 * 1024 * 1024)
    except Exception:
        return 48 * 1024 * 1024


_VMEM_LIMIT = _detect_vmem_limit()
_ROW_TILE_TARGET = 1024 if _VMEM_LIMIT >= 80 * 1024 * 1024 else 512


def _compiler_params(semantics=None):
    return pltpu.CompilerParams(dimension_semantics=semantics,
                                vmem_limit_bytes=_VMEM_LIMIT)


def _silu(y):
    # sigmoid via exp (EUP) + approx reciprocal (EUP) -> no VPU divide
    return y * pl.reciprocal(1.0 + jnp.exp(-y), approx=True)


# ----------------------------------------------------------------------------
# Pallas kernels
# ----------------------------------------------------------------------------

def _pw_kernel(x_ref, w_ref, scale_ref, bias_ref, o_ref, *, act):
    """1x1 conv as bf16 matmul (f32 acc) fused with folded-BN scale/bias + act."""
    y = jnp.dot(x_ref[...], w_ref[...], preferred_element_type=jnp.float32)
    y = y * scale_ref[...] + bias_ref[...]
    if act == "silu":
        y = _silu(y)
    o_ref[...] = y.astype(o_ref.dtype)


def _proj_gate_kernel(x_ref, g_ref, w_ref, scale_ref, bias_ref, o_ref):
    """1x1 projection matmul with the SE channel gate applied as a bf16
    broadcast multiply (no f32 round-trip) and folded BN in the epilogue."""
    xg = x_ref[0] * g_ref[...]                              # (tm, C) * (1, C) bf16
    y = jnp.dot(xg, w_ref[...], preferred_element_type=jnp.float32)
    y = y * scale_ref[...] + bias_ref[...]
    o_ref[0] = y.astype(o_ref.dtype)


def _dw_s1_kernel(x_ref, w_ref, scale_ref, bias_ref, o_ref, psum_ref):
    """3x3 depthwise conv, stride 1, on a pre-padded per-batch block + BN+SiLU.
    Also emits the (1, C) spatial sum of the activation (fused SE pooling)."""
    H, W = o_ref.shape[1], o_ref.shape[2]
    w = w_ref[...]
    acc = jnp.zeros(o_ref.shape, jnp.float32)
    for ky in range(3):
        for kx in range(3):
            tap = x_ref[:, ky:ky + H, kx:kx + W, :].astype(jnp.float32)
            acc = acc + tap * w[ky, kx, :]
    y = _silu(acc * scale_ref[...] + bias_ref[...])
    o_ref[...] = y.astype(o_ref.dtype)
    psum_ref[...] = jnp.sum(y, axis=(1, 2))                 # (1, C) f32


def _dw_s2_kernel(x00_ref, x01_ref, x10_ref, x11_ref,
                  w_ref, scale_ref, bias_ref, o_ref, psum_ref):
    """3x3 depthwise conv, stride 2. Inputs are the 4 space-to-depth phases of
    the padded image so every tap is a unit-stride slice and the (Ho, Wo)
    output is produced directly. Also emits the fused SE pooling sum."""
    Ho, Wo = o_ref.shape[1], o_ref.shape[2]
    phases = ((x00_ref, x01_ref), (x10_ref, x11_ref))
    w = w_ref[...]
    acc = jnp.zeros(o_ref.shape, jnp.float32)
    for ky in range(3):
        dy = ky // 2
        for kx in range(3):
            dx = kx // 2
            ref = phases[ky % 2][kx % 2]
            tap = ref[:, dy:dy + Ho, dx:dx + Wo, :].astype(jnp.float32)
            acc = acc + tap * w[ky, kx, :]
    y = _silu(acc * scale_ref[...] + bias_ref[...])
    o_ref[...] = y.astype(o_ref.dtype)
    psum_ref[...] = jnp.sum(y, axis=(1, 2))                 # (1, C) f32


def _se_fc_kernel(p_ref, w1_ref, b1_ref, w2_ref, b2_ref, o_ref, *, inv_hw):
    """Tiny SE MLP batched over all N: pooled -> FC1 -> SiLU -> FC2 -> sigmoid.
    The pooled sums come from the depthwise kernels; only a divide remains."""
    pooled = p_ref[...] * inv_hw                            # (N, C) f32
    h1 = jnp.dot(pooled, w1_ref[...],
                 preferred_element_type=jnp.float32) + b1_ref[...]
    h1 = _silu(h1)
    h2 = jnp.dot(h1, w2_ref[...],
                 preferred_element_type=jnp.float32) + b2_ref[...]
    # exact sigmoid (tiny tensor) -- gate error would multiply the whole block
    gate = 1.0 / (1.0 + jnp.exp(-h2))
    o_ref[...] = gate.astype(o_ref.dtype)


# ----------------------------------------------------------------------------
# Pallas wrappers
# ----------------------------------------------------------------------------

def _row_tile(m, target=None):
    """Row-tile size: multiple of 8 (or the full dim when small), <= target."""
    if target is None:
        target = _ROW_TILE_TARGET
    if m <= 8:
        return m
    return max(8, min(target, (m // 8) * 8))


def pw_conv(x2d, w, scale, bias, act=None):
    """x2d: (M, K), w: (K, N) bf16 -> (M, N) bf16. Folded BN + act fused."""
    M, K = x2d.shape
    Nc = w.shape[1]
    tm = _row_tile(M)
    return pl.pallas_call(
        functools.partial(_pw_kernel, act=act),
        out_shape=jax.ShapeDtypeStruct((M, Nc), jnp.bfloat16),
        grid=(pl.cdiv(M, tm),),
        in_specs=[
            pl.BlockSpec((tm, K), lambda i: (i, 0)),
            pl.BlockSpec((K, Nc), lambda i: (0, 0)),
            pl.BlockSpec((1, Nc), lambda i: (0, 0)),
            pl.BlockSpec((1, Nc), lambda i: (0, 0)),
        ],
        out_specs=pl.BlockSpec((tm, Nc), lambda i: (i, 0)),
        compiler_params=_compiler_params(("parallel",)),
    )(x2d.astype(jnp.bfloat16), w, scale, bias)


def dw_conv_silu(x, w, scale, bias, stride):
    """x: (N, H, W, C) NHWC bf16, w: (3, 3, C) f32, pad=1, stride in {1, 2}.
    Returns (activation bf16 (N,Ho,Wo,C), spatial-sum f32 (N,C))."""
    N, H, W, C = x.shape
    # TODO(synk): H-tile with a 1-row halo for real B3 resolutions (v7x VMEM).
    if stride == 1:
        xp = jnp.pad(x, ((0, 0), (1, 1), (1, 1), (0, 0)))
        return pl.pallas_call(
            _dw_s1_kernel,
            out_shape=(jax.ShapeDtypeStruct((N, H, W, C), jnp.bfloat16),
                       jax.ShapeDtypeStruct((N, C), jnp.float32)),
            grid=(N,),
            in_specs=[
                pl.BlockSpec((1, H + 2, W + 2, C), lambda n: (n, 0, 0, 0)),
                pl.BlockSpec((3, 3, C), lambda n: (0, 0, 0)),
                pl.BlockSpec((1, C), lambda n: (0, 0)),
                pl.BlockSpec((1, C), lambda n: (0, 0)),
            ],
            out_specs=(pl.BlockSpec((1, H, W, C), lambda n: (n, 0, 0, 0)),
                       pl.BlockSpec((1, C), lambda n: (n, 0))),
            compiler_params=_compiler_params(("parallel",)),
        )(xp, w, scale, bias)

    assert stride == 2 and H % 2 == 0 and W % 2 == 0
    Ho, Wo = H // 2, W // 2
    xp = jnp.pad(x, ((0, 0), (1, 1), (1, 1), (0, 0)))
    # space-to-depth phase split (even/odd rows x even/odd cols); XLA fuses
    # the pad into these strided slices, each (N, Ho+1, Wo+1, C).
    phases = [xp[:, p::2, q::2, :] for p in (0, 1) for q in (0, 1)]
    phase_spec = pl.BlockSpec((1, Ho + 1, Wo + 1, C), lambda n: (n, 0, 0, 0))
    return pl.pallas_call(
        _dw_s2_kernel,
        out_shape=(jax.ShapeDtypeStruct((N, Ho, Wo, C), jnp.bfloat16),
                   jax.ShapeDtypeStruct((N, C), jnp.float32)),
        grid=(N,),
        in_specs=[phase_spec, phase_spec, phase_spec, phase_spec,
                  pl.BlockSpec((3, 3, C), lambda n: (0, 0, 0)),
                  pl.BlockSpec((1, C), lambda n: (0, 0)),
                  pl.BlockSpec((1, C), lambda n: (0, 0))],
        out_specs=(pl.BlockSpec((1, Ho, Wo, C), lambda n: (n, 0, 0, 0)),
                   pl.BlockSpec((1, C), lambda n: (n, 0))),
        compiler_params=_compiler_params(("parallel",)),
    )(*phases, w, scale, bias)


def se_fc(psum, w1, b1, w2, b2, inv_hw):
    """SE MLP on the pre-pooled sums: (N, C) -> (N, C) bf16 gate, one call."""
    N, C = psum.shape
    return pl.pallas_call(
        functools.partial(_se_fc_kernel, inv_hw=inv_hw),
        out_shape=jax.ShapeDtypeStruct((N, C), jnp.bfloat16),
        compiler_params=_compiler_params(),
    )(psum, w1, b1, w2, b2)


def proj_gated(h, gate, w, scale, bias):
    """1x1 projection conv with SE gate and folded BN fused in-kernel."""
    N, Ho, Wo, C = h.shape
    cout = w.shape[1]
    M = Ho * Wo
    x3 = h.reshape(N, M, C)
    tm = _row_tile(M)
    out = pl.pallas_call(
        _proj_gate_kernel,
        out_shape=jax.ShapeDtypeStruct((N, M, cout), jnp.bfloat16),
        grid=(N, pl.cdiv(M, tm)),
        in_specs=[
            pl.BlockSpec((1, tm, C), lambda n, m: (n, m, 0)),
            pl.BlockSpec((1, C), lambda n, m: (n, 0)),
            pl.BlockSpec((C, cout), lambda n, m: (0, 0)),
            pl.BlockSpec((1, cout), lambda n, m: (0, 0)),
            pl.BlockSpec((1, cout), lambda n, m: (0, 0)),
        ],
        out_specs=pl.BlockSpec((1, tm, cout), lambda n, m: (n, m, 0)),
        compiler_params=_compiler_params(("parallel", "parallel")),
    )(x3, gate, w, scale, bias)
    return out.reshape(N, Ho, Wo, cout)


# ----------------------------------------------------------------------------
# Parameter initialization (deterministic, synthetic; BN folded to scale/bias,
# weights pre-cast to bf16 and scale/bias pre-reshaped to (1, C) at init)
# ----------------------------------------------------------------------------

def _bn_fold(key, c, eps=1e-5):
    kg, kb = jax.random.split(key)
    gamma = 1.0 + 0.05 * jax.random.normal(kg, (c,), jnp.float32)
    beta = 0.05 * jax.random.normal(kb, (c,), jnp.float32)
    mean = jnp.zeros((c,), jnp.float32)
    var = jnp.ones((c,), jnp.float32)
    scale = gamma * jax.lax.rsqrt(var + eps)
    bias = beta - mean * scale
    return scale.reshape(1, c), bias.reshape(1, c)


def _conv_bn(key, cin, cout, k):
    kw, kb = jax.random.split(key)
    fan_in = cin * k * k
    w = jax.random.normal(kw, (k, k, cin, cout), jnp.float32) * jnp.sqrt(2.0 / fan_in)
    scale, bias = _bn_fold(kb, cout)
    return w, scale, bias


# per-stage config: (cin, cout, stride, expand_ratio) — single MBConv per stage
_BLOCK_CFG = [
    (40, 24, 1, 1),    # stage1 (stride 2 overall)
    (24, 32, 2, 6),    # stage2 -> feature idx 1 (stride 4, 32 ch)
    (32, 48, 2, 6),    # stage3 -> feature idx 2 (stride 8, 48 ch)
    (48, 96, 2, 6),    # stage4
    (96, 136, 1, 6),   # stage5 -> feature idx 3 (stride 16, 136 ch)
    (136, 232, 2, 6),  # stage6
    (232, 384, 1, 6),  # stage7 -> feature idx 4 (stride 32, 384 ch)
]
_FEATURE_AFTER = (1, 2, 4, 6)  # block indices after which features are taken


def init_params(key):
    keys = iter(jax.random.split(key, 64))
    params = {}

    # stem: 3x3 conv, stride 2, 3 -> 40, BN + SiLU
    w, s, b = _conv_bn(next(keys), 3, 40, 3)
    params["stem"] = {"w": w.reshape(27, 40).astype(jnp.bfloat16),
                      "scale": s, "bias": b}

    blocks = []
    for cin, cout, stride, expand in _BLOCK_CFG:
        bp = {"stride": stride, "expand": expand}
        cmid = cin * expand
        if expand != 1:
            we, se_, be = _conv_bn(next(keys), cin, cmid, 1)
            bp["exp"] = (we.reshape(cin, cmid).astype(jnp.bfloat16), se_, be)
        kd, kdb = jax.random.split(next(keys))
        wd = jax.random.normal(kd, (3, 3, cmid), jnp.float32) * jnp.sqrt(2.0 / 9.0)
        sd, bd = _bn_fold(kdb, cmid)
        bp["dw"] = (wd, sd, bd)
        se_ch = max(1, int(cin * 0.25))
        k1, k2 = jax.random.split(next(keys))
        w1 = jax.random.normal(k1, (cmid, se_ch), jnp.float32) * jnp.sqrt(2.0 / cmid)
        b1 = jnp.zeros((1, se_ch), jnp.float32)
        w2 = jax.random.normal(k2, (se_ch, cmid), jnp.float32) * jnp.sqrt(2.0 / se_ch)
        b2 = jnp.zeros((1, cmid), jnp.float32)
        bp["se"] = (w1, b1, w2, b2)
        wp, sp, bpj = _conv_bn(next(keys), cmid, cout, 1)
        bp["proj"] = (wp.reshape(cmid, cout).astype(jnp.bfloat16), sp, bpj)
        blocks.append(bp)
    params["blocks"] = blocks
    return params


# ----------------------------------------------------------------------------
# Forward pass
# ----------------------------------------------------------------------------

def _mbconv(x, bp):
    N, H, W, cin = x.shape
    h = x
    if bp["expand"] != 1:
        we, se_, be = bp["exp"]
        h = pw_conv(h.reshape(N * H * W, cin), we, se_, be, act="silu")
        h = h.reshape(N, H, W, -1)

    # depthwise conv + BN + SiLU, with the SE global-average-pool sum fused in
    wd, sd, bd = bp["dw"]
    h, psum = dw_conv_silu(h, wd, sd, bd, bp["stride"])
    _, Ho, Wo, _ = h.shape

    # tiny SE MLP on the pre-pooled sums -> (N, cmid) bf16 gate
    w1, b1, w2, b2 = bp["se"]
    gate = se_fc(psum, w1, b1, w2, b2, 1.0 / float(Ho * Wo))

    # linear projection with the gate applied inside the matmul kernel
    wp, sp, bpj = bp["proj"]
    return proj_gated(h, gate, wp, sp, bpj)


def efficientnet_backbone_forward(params, x_nchw):
    """x_nchw: (N, 3, H, W), H and W divisible by 32.
    Returns list of 4 feature maps in NCHW at strides 4/8/16/32 (float32)."""
    x = jnp.transpose(x_nchw, (0, 2, 3, 1)).astype(jnp.float32)    # -> NHWC
    N, H, W, _ = x.shape

    # stem: 3x3 stride-2 conv via im2col (glue) + Pallas bf16 matmul (hot path)
    Ho, Wo = H // 2, W // 2
    xp = jnp.pad(x, ((0, 0), (1, 1), (1, 1), (0, 0)))
    patches = []
    for ky in range(3):
        for kx in range(3):
            patches.append(xp[:, ky:ky + 2 * Ho:2, kx:kx + 2 * Wo:2, :])
    pat = jnp.concatenate(patches, axis=-1).reshape(N * Ho * Wo, 27)
    stem = params["stem"]
    h = pw_conv(pat, stem["w"], stem["scale"], stem["bias"], act="silu")
    h = h.reshape(N, Ho, Wo, -1)

    features = []
    for idx, bp in enumerate(params["blocks"]):
        h = _mbconv(h, bp)
        if idx in _FEATURE_AFTER:
            features.append(h)

    # back to NCHW (float32) to match timm features_only output convention
    return [jnp.transpose(f, (0, 3, 1, 2)).astype(jnp.float32) for f in features]


# ----------------------------------------------------------------------------

if __name__ == "__main__":
    key = jax.random.PRNGKey(0)
    pkey, xkey = jax.random.split(key)

    params = init_params(pkey)
    x = jax.random.normal(xkey, (2, 3, 32, 32), jnp.float32)   # NCHW, like torch

    feats = efficientnet_backbone_forward(params, x)
    feats = [jax.block_until_ready(f) for f in feats]

    expected = [(2, 32, 8, 8), (2, 48, 4, 4), (2, 136, 2, 2), (2, 384, 1, 1)]
    assert [tuple(f.shape) for f in feats] == expected, \
        [tuple(f.shape) for f in feats]
    assert all(bool(jnp.all(jnp.isfinite(f))) for f in feats)

    print("KERNEL_OK")
</pallas_src>

<mosaic_0001>
module attributes {stable_mosaic.version = 11 : i64} {
  func.func @_pw_kernel(%arg0: i32, %arg1: memref<512x27xbf16, #tpu.memory_space<vmem>>, %arg2: memref<27x40xbf16, #tpu.memory_space<vmem>>, %arg3: memref<1x40xf32, #tpu.memory_space<vmem>>, %arg4: memref<1x40xf32, #tpu.memory_space<vmem>>, %arg5: memref<512x40xbf16, #tpu.memory_space<vmem>>) attributes {dimension_semantics = [#tpu.dimension_semantics<parallel>], iteration_bounds = array<i64: 1>, scalar_prefetch = 0 : i64, scratch_operands = 0 : i64, tpu.core_type = #tpu.core_type<tc>, window_params = [{transform_indices = @transform_0, window_bounds = array<i64: 512, 27>}, {pipeline_mode = #tpu.pipeline_mode<synchronous>, transform_indices = @transform_1, window_bounds = array<i64: 27, 40>}, {pipeline_mode = #tpu.pipeline_mode<synchronous>, transform_indices = @transform_2, window_bounds = array<i64: 1, 40>}, {pipeline_mode = #tpu.pipeline_mode<synchronous>, transform_indices = @transform_3, window_bounds = array<i64: 1, 40>}, {transform_indices = @transform_4, window_bounds = array<i64: 512, 40>}]} {
    %c0 = arith.constant 0 : index
    %c0_0 = arith.constant 0 : index
    %0 = vector.load %arg1[%c0, %c0_0] : memref<512x27xbf16, #tpu.memory_space<vmem>>, vector<512x27xbf16>
    %c0_1 = arith.constant 0 : index
    %c0_2 = arith.constant 0 : index
    %1 = vector.load %arg2[%c0_1, %c0_2] : memref<27x40xbf16, #tpu.memory_space<vmem>>, vector<27x40xbf16>
    %cst = arith.constant dense<0.000000e+00> : vector<512x40xf32>
    %2 = tpu.matmul %0, %1, %cst {dimension_numbers = #tpu.dot_dimension_numbers<[1], [0], [0], [1], [0, 0, 1, 1], [], []>} : vector<512x27xbf16>, vector<27x40xbf16>, vector<512x40xf32> -> vector<512x40xf32>
    %c0_3 = arith.constant 0 : index
    %c0_4 = arith.constant 0 : index
    %3 = vector.load %arg3[%c0_3, %c0_4] : memref<1x40xf32, #tpu.memory_space<vmem>>, vector<1x40xf32>
    %4 = vector.broadcast %3 : vector<1x40xf32> to vector<512x40xf32>
    %5 = arith.mulf %2, %4 : vector<512x40xf32>
    %c0_5 = arith.constant 0 : index
    %c0_6 = arith.constant 0 : index
    %6 = vector.load %arg4[%c0_5, %c0_6] : memref<1x40xf32, #tpu.memory_space<vmem>>, vector<1x40xf32>
    %7 = vector.broadcast %6 : vector<1x40xf32> to vector<512x40xf32>
    %8 = arith.addf %5, %7 : vector<512x40xf32>
    %cst_7 = arith.constant 0.000000e+00 : f32
    %9 = vector.broadcast %cst_7 : f32 to vector<512x40xf32>
    %10 = arith.subf %9, %8 : vector<512x40xf32>
    %11 = math.exp %10 : vector<512x40xf32>
    %cst_8 = arith.constant 1.000000e+00 : f32
    %12 = vector.broadcast %cst_8 : f32 to vector<512x40xf32>
    %13 = arith.addf %12, %11 : vector<512x40xf32>
    %14 = tpu.reciprocal %13 {approx = true} : vector<512x40xf32> -> vector<512x40xf32>
    %15 = arith.mulf %8, %14 : vector<512x40xf32>
    %16 = arith.truncf %15 : vector<512x40xf32> to vector<512x40xbf16>
    %c0_9 = arith.constant 0 : index
    %c0_10 = arith.constant 0 : index
    %17 = vector.load %arg5[%c0_9, %c0_10] : memref<512x40xbf16, #tpu.memory_space<vmem>>, vector<512x40xbf16>
    tpu.vector_store %arg5[%c0_9, %c0_10], %16 {strides = array<i32>} : memref<512x40xbf16, #tpu.memory_space<vmem>>, vector<512x40xbf16>,
    return
  }
  func.func @transform_0(%arg0: i32) -> (i32, i32) {
    %c0_i32 = arith.constant 0 : i32
    %c0_i32_0 = arith.constant 0 : i32
    return %arg0, %c0_i32 : i32, i32
  }
  func.func @transform_1(%arg0: i32) -> (i32, i32) {
    %c0_i32 = arith.constant 0 : i32
    %c0_i32_0 = arith.constant 0 : i32
    %c0_i32_1 = arith.constant 0 : i32
    return %c0_i32, %c0_i32_0 : i32, i32
  }
  func.func @transform_2(%arg0: i32) -> (i32, i32) {
    %c0_i32 = arith.constant 0 : i32
    %c0_i32_0 = arith.constant 0 : i32
    %c0_i32_1 = arith.constant 0 : i32
    return %c0_i32, %c0_i32_0 : i32, i32
  }
  func.func @transform_3(%arg0: i32) -> (i32, i32) {
    %c0_i32 = arith.constant 0 : i32
    %c0_i32_0 = arith.constant 0 : i32
    %c0_i32_1 = arith.constant 0 : i32
    return %c0_i32, %c0_i32_0 : i32, i32
  }
  func.func @transform_4(%arg0: i32) -> (i32, i32) {
    %c0_i32 = arith.constant 0 : i32
    %c0_i32_0 = arith.constant 0 : i32
    return %arg0, %c0_i32 : i32, i32
  }
}

</mosaic_0001>

<llo_original>
// kernel: tpu_custom_call.1
$region0: #{tpu_custom_call.1}
  #allocation0 [shape = 'u32[]', space=smem, size = 0x4, offset = 0x4, fixed_abs, tag = 'smem constant byte address 0x4 - core index']
  #allocation1 [shape = 'u32[144,128]{1,0:T(1,128)}', space=vmem, size = 0x12000, scoped, tag = 'internal scratch']
  %s0 = inlined_call_operand.vmem [shape: bf16[512,27], index: 0, kind: input, shape index: {}]
  %s1 = inlined_call_operand.vmem [shape: bf16[27,40], index: 1, kind: input, shape index: {}]
  %s2 = inlined_call_operand.vmem [shape: f32[1,40], index: 2, kind: input, shape index: {}]
  %s3 = inlined_call_operand.vmem [shape: f32[1,40], index: 3, kind: input, shape index: {}]
  %s4 = inlined_call_operand.vmem [shape: bf16[512,40], index: 4, kind: output, shape index: {}]
  %s5 = sld [smem:[#allocation0]]
  $region26: #{tpu_custom_call.1} parent=0
    _
  %s7 = ssub.s32 1, %s5
  %s8 = scalar_select 0, %s7, %s5
  // Predicated region
  $region2: #{tpu_custom_call.1} parent=0 // pred_check
    _
  $region3: #{tpu_custom_call.1} parent=0 // pred_check_branch
    %10 = sbr.rel (0) target = $region5
  $region4: #{tpu_custom_call.1} parent=0 // pred_region
    _
  $region5: #{tpu_custom_call.1} parent=0 // pred_fallthru
    _
  // Predicated region
  $region6: #{tpu_custom_call.1} parent=0 // pred_check
    _
  $region7: #{tpu_custom_call.1} parent=0 // pred_check_branch
    %12 = sbr.rel (0) target = $region9
  $region8: #{tpu_custom_call.1} parent=0 // pred_region
    _
  $region9: #{tpu_custom_call.1} parent=0 // pred_fallthru
    _
  // Predicated region
  $region10: #{tpu_custom_call.1} parent=0 // pred_check
    _
  $region11: #{tpu_custom_call.1} parent=0 // pred_check_branch
    %14 = sbr.rel (0) target = $region13
  $region12: #{tpu_custom_call.1} parent=0 // pred_region
    _
  $region13: #{tpu_custom_call.1} parent=0 // pred_fallthru
    _
  // Predicated region
  $region14: #{tpu_custom_call.1} parent=0 // pred_check
    _
  $region15: #{tpu_custom_call.1} parent=0 // pred_check_branch
    %16 = sbr.rel (0) target = $region17
  $region16: #{tpu_custom_call.1} parent=0 // pred_region
    _
  $region17: #{tpu_custom_call.1} parent=0 // pred_fallthru
    _
  %v18 = vld [vmem:[%s0] sm:$0xf]
  %v19 = vld [vmem:[%s0 + $0x4] sm:$0xf]
  %v20 = vld [vmem:[%s0 + $0x8] sm:$0xf]
  %v21 = vld [vmem:[%s0 + $0xc] sm:$0xf]
  %v22 = vld [vmem:[%s0 + $0x10] sm:$0xf]
  %v23 = vld [vmem:[%s0 + $0x14] sm:$0xf]
  %v24 = vld [vmem:[%s0 + $0x18] sm:$0xf]
  %v25 = vld [vmem:[%s0 + $0x1c] sm:$0xf]
  %v26 = vld [vmem:[%s0 + $0x20] sm:$0xf]
  %v27 = vld [vmem:[%s0 + $0x24] sm:$0xf]
  %v28 = vld [vmem:[%s0 + $0x28] sm:$0xf]
  %v29 = vld [vmem:[%s0 + $0x2c] sm:$0xf]
  %v30 = vld [vmem:[%s0 + $0x30] sm:$0xf]
  %v31 = vld [vmem:[%s0 + $0x34] sm:$0xf]
  %v32 = vld [vmem:[%s0 + $0x38] sm:$0xf]
  %v33 = vld [vmem:[%s0 + $0x3c] sm:$0xf]
  %v34 = vld [vmem:[%s0 + $0x40] sm:$0xf]
  %v35 = vld [vmem:[%s0 + $0x44] sm:$0xf]
  %v36 = vld [vmem:[%s0 + $0x48] sm:$0xf]
  %v37 = vld [vmem:[%s0 + $0x4c] sm:$0xf]
  %v38 = vld [vmem:[%s0 + $0x50] sm:$0xf]
  %v39 = vld [vmem:[%s0 + $0x54] sm:$0xf]
  %v40 = vld [vmem:[%s0 + $0x58] sm:$0xf]
  %v41 = vld [vmem:[%s0 + $0x5c] sm:$0xf]
  %v42 = vld [vmem:[%s0 + $0x60] sm:$0xf]
  %v43 = vld [vmem:[%s0 + $0x64] sm:$0xf]
  %v44 = vld [vmem:[%s0 + $0x68] sm:$0xf]
  %v45 = vld [vmem:[%s0 + $0x6c] sm:$0xf]
  %v46 = vld [vmem:[%s0 + $0x70] sm:$0xf]
  %v47 = vld [vmem:[%s0 + $0x74] sm:$0xf]
  %v48 = vld [vmem:[%s0 + $0x78] sm:$0xf]
  %v49 = vld [vmem:[%s0 + $0x7c] sm:$0xf]
  %v50 = vld [vmem:[%s0 + $0x80] sm:$0xf]
  %v51 = vld [vmem:[%s0 + $0x84] sm:$0xf]
  %v52 = vld [vmem:[%s0 + $0x88] sm:$0xf]
  %v53 = vld [vmem:[%s0 + $0x8c] sm:$0xf]
  %v54 = vld [vmem:[%s0 + $0x90] sm:$0xf]
  %v55 = vld [vmem:[%s0 + $0x94] sm:$0xf]
  %v56 = vld [vmem:[%s0 + $0x98] sm:$0xf]
  %v57 = vld [vmem:[%s0 + $0x9c] sm:$0xf]
  %v58 = vld [vmem:[%s0 + $0xa0] sm:$0xf]
  %v59 = vld [vmem:[%s0 + $0xa4] sm:$0xf]
  %v60 = vld [vmem:[%s0 + $0xa8] sm:$0xf]
  %v61 = vld [vmem:[%s0 + $0xac] sm:$0xf]
  %v62 = vld [vmem:[%s0 + $0xb0] sm:$0xf]
  %v63 = vld [vmem:[%s0 + $0xb4] sm:$0xf]
  %v64 = vld [vmem:[%s0 + $0xb8] sm:$0xf]
  %v65 = vld [vmem:[%s0 + $0xbc] sm:$0xf]
  %v66 = vld [vmem:[%s0 + $0xc0] sm:$0xf]
  %v67 = vld [vmem:[%s0 + $0xc4] sm:$0xf]
  %v68 = vld [vmem:[%s0 + $0xc8] sm:$0xf]
  %v69 = vld [vmem:[%s0 + $0xcc] sm:$0xf]
  %v70 = vld [vmem:[%s0 + $0xd0] sm:$0xf]
  %v71 = vld [vmem:[%s0 + $0xd4] sm:$0xf]
  %v72 = vld [vmem:[%s0 + $0xd8] sm:$0xf]
  %v73 = vld [vmem:[%s0 + $0xdc] sm:$0xf]
  %v74 = vld [vmem:[%s0 + $0xe0] sm:$0xf]
  %v75 = vld [vmem:[%s0 + $0xe4] sm:$0xf]
  %v76 = vld [vmem:[%s0 + $0xe8] sm:$0xf]
  %v77 = vld [vmem:[%s0 + $0xec] sm:$0xf]
  %v78 = vld [vmem:[%s0 + $0xf0] sm:$0xf]
  %v79 = vld [vmem:[%s0 + $0xf4] sm:$0xf]
  %v80 = vld [vmem:[%s0 + $0xf8] sm:$0xf]
  %v81 = vld [vmem:[%s0 + $0xfc] sm:$0xf]
  %v82 = vld [vmem:[%s1] sm:$0xf]
  %v83 = vld [vmem:[%s1 + $0x4] sm:$0xf]
  %v84 = vld [vmem:[%s1 + $0x8] sm:$0xf]
  %v85 = vld [vmem:[%s1 + $0xc] sm:$0x3]
  %v150 = vunpack.c.l.b16 %v18
  %v151 = vunpack.c.l.b16 %v19
  %v152 = vunpack.c.l.b16 %v20
  %v153 = vunpack.c.l.b16 %v21
  %v154 = vunpack.c.l.b16 %v22
  %v155 = vunpack.c.l.b16 %v23
  %v156 = vunpack.c.l.b16 %v24
  %v157 = vunpack.c.l.b16 %v25
  %v158 = vunpack.c.l.b16 %v26
  %v159 = vunpack.c.l.b16 %v27
  %v160 = vunpack.c.l.b16 %v28
  %v161 = vunpack.c.l.b16 %v29
  %v162 = vunpack.c.l.b16 %v30
  %v163 = vunpack.c.l.b16 %v31
  %v164 = vunpack.c.l.b16 %v32
  %v165 = vunpack.c.l.b16 %v33
  %v166 = vunpack.c.l.b16 %v34
  %v167 = vunpack.c.l.b16 %v35
  %v168 = vunpack.c.l.b16 %v36
  %v169 = vunpack.c.l.b16 %v37
  %v170 = vunpack.c.l.b16 %v38
  %v171 = vunpack.c.l.b16 %v39
  %v172 = vunpack.c.l.b16 %v40
  %v173 = vunpack.c.l.b16 %v41
  %v174 = vunpack.c.l.b16 %v42
  %v175 = vunpack.c.l.b16 %v43
  %v176 = vunpack.c.l.b16 %v44
  %v177 = vunpack.c.l.b16 %v45
  %v178 = vunpack.c.l.b16 %v46
  %v179 = vunpack.c.l.b16 %v47
  %v180 = vunpack.c.l.b16 %v48
  %v181 = vunpack.c.l.b16 %v49
  %v182 = vunpack.c.l.b16 %v50
  %v183 = vunpack.c.l.b16 %v51
  %v184 = vunpack.c.l.b16 %v52
  %v185 = vunpack.c.l.b16 %v53
  %v186 = vunpack.c.l.b16 %v54
  %v187 = vunpack.c.l.b16 %v55
  %v188 = vunpack.c.l.b16 %v56
  %v189 = vunpack.c.l.b16 %v57
  %v190 = vunpack.c.l.b16 %v58
  %v191 = vunpack.c.l.b16 %v59
  %v192 = vunpack.c.l.b16 %v60
  %v193 = vunpack.c.l.b16 %v61
  %v194 = vunpack.c.l.b16 %v62
  %v195 = vunpack.c.l.b16 %v63
  %v196 = vunpack.c.l.b16 %v64
  %v197 = vunpack.c.l.b16 %v65
  %v198 = vunpack.c.l.b16 %v66
  %v199 = vunpack.c.l.b16 %v67
  %v200 = vunpack.c.l.b16 %v68
  %v201 = vunpack.c.l.b16 %v69
  %v202 = vunpack.c.l.b16 %v70
  %v203 = vunpack.c.l.b16 %v71
  %v204 = vunpack.c.l.b16 %v72
  %v205 = vunpack.c.l.b16 %v73
  %v206 = vunpack.c.l.b16 %v74
  %v207 = vunpack.c.l.b16 %v75
  %v208 = vunpack.c.l.b16 %v76
  %v209 = vunpack.c.l.b16 %v77
  %v210 = vunpack.c.l.b16 %v78
  %v211 = vunpack.c.l.b16 %v79
  %v212 = vunpack.c.l.b16 %v80
  %v213 = vunpack.c.l.b16 %v81
  %v214 = vpack.c.b16 %v151, %v150
  %v215 = vpack.c.b16 %v153, %v152
  %v216 = vpack.c.b16 %v155, %v154
  %v217 = vpack.c.b16 %v157, %v156
  %v218 = vpack.c.b16 %v159, %v158
  %v219 = vpack.c.b16 %v161, %v160
  %v220 = vpack.c.b16 %v163, %v162
  %v221 = vpack.c.b16 %v165, %v164
  %v222 = vpack.c.b16 %v167, %v166
  %v223 = vpack.c.b16 %v169, %v168
  %v224 = vpack.c.b16 %v171, %v170
  %v225 = vpack.c.b16 %v173, %v172
  %v226 = vpack.c.b16 %v175, %v174
  %v227 = vpack.c.b16 %v177, %v176
  %v228 = vpack.c.b16 %v179, %v178
  %v229 = vpack.c.b16 %v181, %v180
  %v230 = vpack.c.b16 %v183, %v182
  %v231 = vpack.c.b16 %v185, %v184
  %v232 = vpack.c.b16 %v187, %v186
  %v233 = vpack.c.b16 %v189, %v188
  %v234 = vpack.c.b16 %v191, %v190
  %v235 = vpack.c.b16 %v193, %v192
  %v236 = vpack.c.b16 %v195, %v194
  %v237 = vpack.c.b16 %v197, %v196
  %v238 = vpack.c.b16 %v199, %v198
  %v239 = vpack.c.b16 %v201, %v200
  %v240 = vpack.c.b16 %v203, %v202
  %v241 = vpack.c.b16 %v205, %v204
  %v242 = vpack.c.b16 %v207, %v206
  %v243 = vpack.c.b16 %v209, %v208
  %v244 = vpack.c.b16 %v211, %v210
  %v245 = vpack.c.b16 %v213, %v212
  %v250 = vunpack.c.l.b16 %v82
  %v251 = vunpack.c.l.b16 %v83
  %v252 = vunpack.c.l.b16 %v84
  %v253 = vunpack.c.l.b16 %v85
  %v254 = vpack.c.b16 %v251, %v250
  %v255 = vpack.c.b16 %v253, %v252
  %vm257 = vcmask 220160
  %v259 = vsel %vm257, %v214, 0
  %v262 = vsel %vm257, %v215, 0
  %v265 = vsel %vm257, %v216, 0
  %v268 = vsel %vm257, %v217, 0
  %v271 = vsel %vm257, %v218, 0
  %v274 = vsel %vm257, %v219, 0
  %v277 = vsel %vm257, %v220, 0
  %v280 = vsel %vm257, %v221, 0
  %v283 = vsel %vm257, %v222, 0
  %v286 = vsel %vm257, %v223, 0
  %v289 = vsel %vm257, %v224, 0
  %v292 = vsel %vm257, %v225, 0
  %v295 = vsel %vm257, %v226, 0
  %v298 = vsel %vm257, %v227, 0
  %v301 = vsel %vm257, %v228, 0
  %v304 = vsel %vm257, %v229, 0
  %v307 = vsel %vm257, %v230, 0
  %v310 = vsel %vm257, %v231, 0
  %v313 = vsel %vm257, %v232, 0
  %v316 = vsel %vm257, %v233, 0
  %v319 = vsel %vm257, %v234, 0
  %v322 = vsel %vm257, %v235, 0
  %v325 = vsel %vm257, %v236, 0
  %v328 = vsel %vm257, %v237, 0
  %v331 = vsel %vm257, %v238, 0
  %v334 = vsel %vm257, %v239, 0
  %v337 = vsel %vm257, %v240, 0
  %v340 = vsel %vm257, %v241, 0
  %v343 = vsel %vm257, %v242, 0
  %v346 = vsel %vm257, %v243, 0
  %v349 = vsel %vm257, %v244, 0
  %v352 = vsel %vm257, %v245, 0
  %vm354 = vcmask 1044480
  %vm355 = vcmask 1045504
  %v356 = vsel %vm354, 4294967295, 65535
  %v357 = vsel %vm355, %v356, 0
  %v359 = vand.u32 %v255, %v357
  %361 = vmatprep.subr.bf16.mxu0 0
  %362 = vmatpush1.bf16.msra.mxu0 %v254
  %363 = vmatprep.subr.bf16.mxu0 0
  %364 = vmatpush1.bf16.msra.mxu0 %v359
  %365 = vmatprep.subr.bf16.mxu0 0
  %366 = vmatpush1.bf16.msra.mxu0 0
  %367 = vmatprep.subr.bf16.mxu0 0
  %368 = vmatpush1.bf16.msra.mxu0 0
  %369 = vmatprep.subr.bf16.mxu0 0
  %370 = vmatpush1.bf16.msra.mxu0 0
  %371 = vmatprep.subr.bf16.mxu0 0
  %372 = vmatpush1.bf16.msra.mxu0 0
  %373 = vmatprep.subr.bf16.mxu0 0
  %374 = vmatpush1.bf16.msra.mxu0 0
  %375 = vmatprep.subr.bf16.mxu0 0
  %376 = vmatpush1.bf16.msra.mxu0 0
  %377 = vmatprep.subr.bf16.mxu0 0
  %378 = vmatpush1.bf16.msra.mxu0 0
  %379 = vmatprep.subr.bf16.mxu0 0
  %380 = vmatpush1.bf16.msra.mxu0 0
  %381 = vmatprep.subr.bf16.mxu0 0
  %382 = vmatpush1.bf16.msra.mxu0 0
  %383 = vmatprep.subr.bf16.mxu0 0
  %384 = vmatpush1.bf16.msra.mxu0 0
  %385 = vmatprep.subr.bf16.mxu0 0
  %386 = vmatpush1.bf16.msra.mxu0 0
  %387 = vmatprep.subr.bf16.mxu0 0
  %388 = vmatpush1.bf16.msra.mxu0 0
  %389 = vmatprep.subr.bf16.mxu0 0
  %390 = vmatpush1.bf16.msra.mxu0 0
  %391 = vmatprep.subr.bf16.mxu0 0
  %392 = vmatpush1.bf16.msra.mxu0 0
  %393 = vmatprep.mubr.bf16.mxu0 0
  %394 = vmatmul.mubr.bf16.gmra.mrb[0].mxu0 %v259
  %v395 = vpop.f32.mrb[0].mxu0
  %v396 = vadd.f32 0.0, %v395
  %v397 = vpop.f32.mrb[0].mxu0
  %v398 = vpop.f32.mrb[0].mxu0
  %v399 = vadd.f32 0.0, %v398
  %v400 = vpop.f32.mrb[0].mxu0
  %401 = vmatprep.mubr.bf16.mxu0 0
  %402 = vmatmul.mubr.bf16.gmra.mrb[0].mxu0 %v262
  %v403 = vpop.f32.mrb[0].mxu0
  %v404 = vadd.f32 0.0, %v403
  %v405 = vpop.f32.mrb[0].mxu0
  %v406 = vpop.f32.mrb[0].mxu0
  %v407 = vadd.f32 0.0, %v406
  %v408 = vpop.f32.mrb[0].mxu0
  %409 = vmatprep.mubr.bf16.mxu0 0
  %410 = vmatmul.mubr.bf16.gmra.mrb[0].mxu0 %v265
  %v411 = vpop.f32.mrb[0].mxu0
  %v412 = vadd.f32 0.0, %v411
  %v413 = vpop.f32.mrb[0].mxu0
  %v414 = vpop.f32.mrb[0].mxu0
  %v415 = vadd.f32 0.0, %v414
  %v416 = vpop.f32.mrb[0].mxu0
  %417 = vmatprep.mubr.bf16.mxu0 0
  %418 = vmatmul.mubr.bf16.gmra.mrb[0].mxu0 %v268
  %v419 = vpop.f32.mrb[0].mxu0
  %v420 = vadd.f32 0.0, %v419
  %v421 = vpop.f32.mrb[0].mxu0
  %v422 = vpop.f32.mrb[0].mxu0
  %v423 = vadd.f32 0.0, %v422
  %v424 = vpop.f32.mrb[0].mxu0
  %425 = vmatprep.mubr.bf16.mxu0 0
  %426 = vmatmul.mubr.bf16.gmra.mrb[0].mxu0 %v271
  %v427 = vpop.f32.mrb[0].mxu0
  %v428 = vadd.f32 0.0, %v427
  %v429 = vpop.f32.mrb[0].mxu0
  %v430 = vpop.f32.mrb[0].mxu0
  %v431 = vadd.f32 0.0, %v430
  %v432 = vpop.f32.mrb[0].mxu0
  %433 = vmatprep.mubr.bf16.mxu0 0
  %434 = vmatmul.mubr.bf16.gmra.mrb[0].mxu0 %v274
  %v435 = vpop.f32.mrb[0].mxu0
  %v436 = vadd.f32 0.0, %v435
  %v437 = vpop.f32.mrb[0].mxu0
  %v438 = vpop.f32.mrb[0].mxu0
  %v439 = vadd.f32 0.0, %v438
  %v440 = vpop.f32.mrb[0].mxu0
  %441 = vmatprep.mubr.bf16.mxu0 0
  %442 = vmatmul.mubr.bf16.gmra.mrb[0].mxu0 %v277
  %v443 = vpop.f32.mrb[0].mxu0
  %v444 = vadd.f32 0.0, %v443
  %v445 = vpop.f32.mrb[0].mxu0
  %v446 = vpop.f32.mrb[0].mxu0
  %v447 = vadd.f32 0.0, %v446
  %v448 = vpop.f32.mrb[0].mxu0
  %449 = vmatprep.mubr.bf16.mxu0 0
  %450 = vmatmul.mubr.bf16.gmra.mrb[0].mxu0 %v280
  %v451 = vpop.f32.mrb[0].mxu0
  %v452 = vadd.f32 0.0, %v451
  %v453 = vpop.f32.mrb[0].mxu0
  %v454 = vpop.f32.mrb[0].mxu0
  %v455 = vadd.f32 0.0, %v454
  %v456 = vpop.f32.mrb[0].mxu0
  %457 = vmatprep.mubr.bf16.mxu0 0
  %458 = vmatmul.mubr.bf16.gmra.mrb[0].mxu0 %v283
  %v459 = vpop.f32.mrb[0].mxu0
  %v460 = vadd.f32 0.0, %v459
  %v461 = vpop.f32.mrb[0].mxu0
  %v462 = vpop.f32.mrb[0].mxu0
  %v463 = vadd.f32 0.0, %v462
  %v464 = vpop.f32.mrb[0].mxu0
  %465 = vmatprep.mubr.bf16.mxu0 0
  %466 = vmatmul.mubr.bf16.gmra.mrb[0].mxu0 %v286
  %v467 = vpop.f32.mrb[0].mxu0
  %v468 = vadd.f32 0.0, %v467
  %v469 = vpop.f32.mrb[0].mxu0
  %v470 = vpop.f32.mrb[0].mxu0
  %v471 = vadd.f32 0.0, %v470
  %v472 = vpop.f32.mrb[0].mxu0
  %473 = vmatprep.mubr.bf16.mxu0 0
  %474 = vmatmul.mubr.bf16.gmra.mrb[0].mxu0 %v289
  %v475 = vpop.f32.mrb[0].mxu0
  %v476 = vadd.f32 0.0, %v475
  %v477 = vpop.f32.mrb[0].mxu0
  %v478 = vpop.f32.mrb[0].mxu0
  %v479 = vadd.f32 0.0, %v478
  %v480 = vpop.f32.mrb[0].mxu0
  %481 = vmatprep.mubr.bf16.mxu0 0
  %482 = vmatmul.mubr.bf16.gmra.mrb[0].mxu0 %v292
  %v483 = vpop.f32.mrb[0].mxu0
  %v484 = vadd.f32 0.0, %v483
  %v485 = vpop.f32.mrb[0].mxu0
  %v486 = vpop.f32.mrb[0].mxu0
  %v487 = vadd.f32 0.0, %v486
  %v488 = vpop.f32.mrb[0].mxu0
  %489 = vmatprep.mubr.bf16.mxu0 0
  %490 = vmatmul.mubr.bf16.gmra.mrb[0].mxu0 %v295
  %v491 = vpop.f32.mrb[0].mxu0
  %v492 = vadd.f32 0.0, %v491
  %v493 = vpop.f32.mrb[0].mxu0
  %v494 = vpop.f32.mrb[0].mxu0
  %v495 = vadd.f32 0.0, %v494
  %v496 = vpop.f32.mrb[0].mxu0
  %497 = vmatprep.mubr.bf16.mxu0 0
  %498 = vmatmul.mubr.bf16.gmra.mrb[0].mxu0 %v298
  %v499 = vpop.f32.mrb[0].mxu0
  %v500 = vadd.f32 0.0, %v499
  %v501 = vpop.f32.mrb[0].mxu0
  %v502 = vpop.f32.mrb[0].mxu0
  %v503 = vadd.f32 0.0, %v502
  %v504 = vpop.f32.mrb[0].mxu0
  %505 = vmatprep.mubr.bf16.mxu0 0
  %506 = vmatmul.mubr.bf16.gmra.mrb[0].mxu0 %v301
  %v507 = vpop.f32.mrb[0].mxu0
  %v508 = vadd.f32 0.0, %v507
  %v509 = vpop.f32.mrb[0].mxu0
  %v510 = vpop.f32.mrb[0].mxu0
  %v511 = vadd.f32 0.0, %v510
  %v512 = vpop.f32.mrb[0].mxu0
  %513 = vmatprep.mubr.bf16.mxu0 0
  %514 = vmatmul.mubr.bf16.gmra.mrb[0].mxu0 %v304
  %v515 = vpop.f32.mrb[0].mxu0
  %v516 = vadd.f32 0.0, %v515
  %v517 = vpop.f32.mrb[0].mxu0
  %v518 = vpop.f32.mrb[0].mxu0
  %v519 = vadd.f32 0.0, %v518
  %v520 = vpop.f32.mrb[0].mxu0
  %521 = vmatprep.mubr.bf16.mxu0 0
  %522 = vmatmul.mubr.bf16.gmra.mrb[0].mxu0 %v307
  %v523 = vpop.f32.mrb[0].mxu0
  %v524 = vadd.f32 0.0, %v523
  %v525 = vpop.f32.mrb[0].mxu0
  %v526 = vpop.f32.mrb[0].mxu0
  %v527 = vadd.f32 0.0, %v526
  %v528 = vpop.f32.mrb[0].mxu0
  %529 = vmatprep.mubr.bf16.mxu0 0
  %530 = vmatmul.mubr.bf16.gmra.mrb[0].mxu0 %v310
  %v531 = vpop.f32.mrb[0].mxu0
  %v532 = vadd.f32 0.0, %v531
  %v533 = vpop.f32.mrb[0].mxu0
  %v534 = vpop.f32.mrb[0].mxu0
  %v535 = vadd.f32 0.0, %v534
  %v536 = vpop.f32.mrb[0].mxu0
  %537 = vmatprep.mubr.bf16.mxu0 0
  %538 = vmatmul.mubr.bf16.gmra.mrb[0].mxu0 %v313
  %v539 = vpop.f32.mrb[0].mxu0
  %v540 = vadd.f32 0.0, %v539
  %v541 = vpop.f32.mrb[0].mxu0
  %v542 = vpop.f32.mrb[0].mxu0
  %v543 = vadd.f32 0.0, %v542
  %v544 = vpop.f32.mrb[0].mxu0
  %545 = vmatprep.mubr.bf16.mxu0 0
  %546 = vmatmul.mubr.bf16.gmra.mrb[0].mxu0 %v316
  %v547 = vpop.f32.mrb[0].mxu0
  %v548 = vadd.f32 0.0, %v547
  %v549 = vpop.f32.mrb[0].mxu0
  %v550 = vpop.f32.mrb[0].mxu0
  %v551 = vadd.f32 0.0, %v550
  %v552 = vpop.f32.mrb[0].mxu0
  %553 = vmatprep.mubr.bf16.mxu0 0
  %554 = vmatmul.mubr.bf16.gmra.mrb[0].mxu0 %v319
  %v555 = vpop.f32.mrb[0].mxu0
  %v556 = vadd.f32 0.0, %v555
  %v557 = vpop.f32.mrb[0].mxu0
  %v558 = vpop.f32.mrb[0].mxu0
  %v559 = vadd.f32 0.0, %v558
  %v560 = vpop.f32.mrb[0].mxu0
  %561 = vmatprep.mubr.bf16.mxu0 0
  %562 = vmatmul.mubr.bf16.gmra.mrb[0].mxu0 %v322
  %v563 = vpop.f32.mrb[0].mxu0
  %v564 = vadd.f32 0.0, %v563
  %v565 = vpop.f32.mrb[0].mxu0
  %v566 = vpop.f32.mrb[0].mxu0
  %v567 = vadd.f32 0.0, %v566
  %v568 = vpop.f32.mrb[0].mxu0
  %569 = vmatprep.mubr.bf16.mxu0 0
  %570 = vmatmul.mubr.bf16.gmra.mrb[0].mxu0 %v325
  %v571 = vpop.f32.mrb[0].mxu0
  %v572 = vadd.f32 0.0, %v571
  %v573 = vpop.f32.mrb[0].mxu0
  %v574 = vpop.f32.mrb[0].mxu0
  %v575 = vadd.f32 0.0, %v574
  %v576 = vpop.f32.mrb[0].mxu0
  %577 = vmatprep.mubr.bf16.mxu0 0
  %578 = vmatmul.mubr.bf16.gmra.mrb[0].mxu0 %v328
  %v579 = vpop.f32.mrb[0].mxu0
  %v580 = vadd.f32 0.0, %v579
  %v581 = vpop.f32.mrb[0].mxu0
  %v582 = vpop.f32.mrb[0].mxu0
  %v583 = vadd.f32 0.0, %v582
  %v584 = vpop.f32.mrb[0].mxu0
  %585 = vmatprep.mubr.bf16.mxu0 0
  %586 = vmatmul.mubr.bf16.gmra.mrb[0].mxu0 %v331
  %v587 = vpop.f32.mrb[0].mxu0
  %v588 = vadd.f32 0.0, %v587
  %v589 = vpop.f32.mrb[0].mxu0
  %v590 = vpop.f32.mrb[0].mxu0
  %v591 = vadd.f32 0.0, %v590
  %v592 = vpop.f32.mrb[0].mxu0
  %593 = vmatprep.mubr.bf16.mxu0 0
  %594 = vmatmul.mubr.bf16.gmra.mrb[0].mxu0 %v334
  %v595 = vpop.f32.mrb[0].mxu0
  %v596 = vadd.f32 0.0, %v595
  %v597 = vpop.f32.mrb[0].mxu0
  %v598 = vpop.f32.mrb[0].mxu0
  %v599 = vadd.f32 0.0, %v598
  %v600 = vpop.f32.mrb[0].mxu0
  %601 = vmatprep.mubr.bf16.mxu0 0
  %602 = vmatmul.mubr.bf16.gmra.mrb[0].mxu0 %v337
  %v603 = vpop.f32.mrb[0].mxu0
  %v604 = vadd.f32 0.0, %v603
  %v605 = vpop.f32.mrb[0].mxu0
  %v606 = vpop.f32.mrb[0].mxu0
  %v607 = vadd.f32 0.0, %v606
  %v608 = vpop.f32.mrb[0].mxu0
  %609 = vmatprep.mubr.bf16.mxu0 0
  %610 = vmatmul.mubr.bf16.gmra.mrb[0].mxu0 %v340
  %v611 = vpop.f32.mrb[0].mxu0
  %v612 = vadd.f32 0.0, %v611
  %v613 = vpop.f32.mrb[0].mxu0
  %v614 = vpop.f32.mrb[0].mxu0
  %v615 = vadd.f32 0.0, %v614
  %v616 = vpop.f32.mrb[0].mxu0
  %617 = vmatprep.mubr.bf16.mxu0 0
  %618 = vmatmul.mubr.bf16.gmra.mrb[0].mxu0 %v343
  %v619 = vpop.f32.mrb[0].mxu0
  %v620 = vadd.f32 0.0, %v619
  %v621 = vpop.f32.mrb[0].mxu0
  %v622 = vpop.f32.mrb[0].mxu0
  %v623 = vadd.f32 0.0, %v622
  %v624 = vpop.f32.mrb[0].mxu0
  %625 = vmatprep.mubr.bf16.mxu0 0
  %626 = vmatmul.mubr.bf16.gmra.mrb[0].mxu0 %v346
  %v627 = vpop.f32.mrb[0].mxu0
  %v628 = vadd.f32 0.0, %v627
  %v629 = vpop.f32.mrb[0].mxu0
  %v630 = vpop.f32.mrb[0].mxu0
  %v631 = vadd.f32 0.0, %v630
  %v632 = vpop.f32.mrb[0].mxu0
  %633 = vmatprep.mubr.bf16.mxu0 0
  %634 = vmatmul.mubr.bf16.gmra.mrb[0].mxu0 %v349
  %v635 = vpop.f32.mrb[0].mxu0
  %v636 = vadd.f32 0.0, %v635
  %v637 = vpop.f32.mrb[0].mxu0
  %v638 = vpop.f32.mrb[0].mxu0
  %v639 = vadd.f32 0.0, %v638
  %v640 = vpop.f32.mrb[0].mxu0
  %641 = vmatprep.mubr.bf16.mxu0 0
  %642 = vmatmul.mubr.bf16.gmra.mrb[0].mxu0 %v352
  %v643 = vpop.f32.mrb[0].mxu0
  %v644 = vadd.f32 0.0, %v643
  %v645 = vpop.f32.mrb[0].mxu0
  %v646 = vpop.f32.mrb[0].mxu0
  %v647 = vadd.f32 0.0, %v646
  %v648 = vpop.f32.mrb[0].mxu0
  %649 = vdwg.mxu0
  %v650 = vld [vmem:[%s2] sm:$0x1]
  %v652 = vlaneseq
  %v653 = vshrl.u32 %v652, 7
  %v654 = vsub.s32 0, %v653
  %v655 = vrot.slane %v650, %v654
  %v657 = vmul.f32 %v396, %v655
  %v658 = vmul.f32 %v399, %v655
  %v659 = vmul.f32 %v404, %v655
  %v660 = vmul.f32 %v407, %v655
  %v661 = vmul.f32 %v412, %v655
  %v662 = vmul.f32 %v415, %v655
  %v663 = vmul.f32 %v420, %v655
  %v664 = vmul.f32 %v423, %v655
  %v665 = vmul.f32 %v428, %v655
  %v666 = vmul.f32 %v431, %v655
  %v667 = vmul.f32 %v436, %v655
  %v668 = vmul.f32 %v439, %v655
  %v669 = vmul.f32 %v444, %v655
  %v670 = vmul.f32 %v447, %v655
  %v671 = vmul.f32 %v452, %v655
  %v672 = vmul.f32 %v455, %v655
  %v673 = vmul.f32 %v460, %v655
  %v674 = vmul.f32 %v463, %v655
  %v675 = vmul.f32 %v468, %v655
  %v676 = vmul.f32 %v471, %v655
  %v677 = vmul.f32 %v476, %v655
  %v678 = vmul.f32 %v479, %v655
  %v679 = vmul.f32 %v484, %v655
  %v680 = vmul.f32 %v487, %v655
  %v681 = vmul.f32 %v492, %v655
  %v682 = vmul.f32 %v495, %v655
  %v683 = vmul.f32 %v500, %v655
  %v684 = vmul.f32 %v503, %v655
  %v685 = vmul.f32 %v508, %v655
  %v686 = vmul.f32 %v511, %v655
  %v687 = vmul.f32 %v516, %v655
  %v688 = vmul.f32 %v519, %v655
  %v689 = vmul.f32 %v524, %v655
  %v690 = vmul.f32 %v527, %v655
  %v691 = vmul.f32 %v532, %v655
  %v692 = vmul.f32 %v535, %v655
  %v693 = vmul.f32 %v540, %v655
  %v694 = vmul.f32 %v543, %v655
  %v695 = vmul.f32 %v548, %v655
  %v696 = vmul.f32 %v551, %v655
  %v697 = vmul.f32 %v556, %v655
  %v698 = vmul.f32 %v559, %v655
  %v699 = vmul.f32 %v564, %v655
  %v700 = vmul.f32 %v567, %v655
  %v701 = vmul.f32 %v572, %v655
  %v702 = vmul.f32 %v575, %v655
  %v703 = vmul.f32 %v580, %v655
  %v704 = vmul.f32 %v583, %v655
  %v705 = vmul.f32 %v588, %v655
  %v706 = vmul.f32 %v591, %v655
  %v707 = vmul.f32 %v596, %v655
  %v708 = vmul.f32 %v599, %v655
  %v709 = vmul.f32 %v604, %v655
  %v710 = vmul.f32 %v607, %v655
  %v711 = vmul.f32 %v612, %v655
  %v712 = vmul.f32 %v615, %v655
  %v713 = vmul.f32 %v620, %v655
  %v714 = vmul.f32 %v623, %v655
  %v715 = vmul.f32 %v628, %v655
  %v716 = vmul.f32 %v631, %v655
  %v717 = vmul.f32 %v636, %v655
  %v718 = vmul.f32 %v639, %v655
  %v719 = vmul.f32 %v644, %v655
  %v720 = vmul.f32 %v647, %v655
  %v721 = vld [vmem:[%s3] sm:$0x1]
  %v723 = vlaneseq
  %v724 = vshrl.u32 %v723, 7
  %v725 = vsub.s32 0, %v724
  %v726 = vrot.slane %v721, %v725
  %v728 = vadd.f32 %v657, %v726
  %v729 = vadd.f32 %v658, %v726
  %v730 = vadd.f32 %v659, %v726
  %v731 = vadd.f32 %v660, %v726
  %v732 = vadd.f32 %v661, %v726
  %v733 = vadd.f32 %v662, %v726
  %v734 = vadd.f32 %v663, %v726
  %v735 = vadd.f32 %v664, %v726
  %v736 = vadd.f32 %v665, %v726
  %v737 = vadd.f32 %v666, %v726
  %v738 = vadd.f32 %v667, %v726
  %v739 = vadd.f32 %v668, %v726
  %v740 = vadd.f32 %v669, %v726
  %v741 = vadd.f32 %v670, %v726
  %v742 = vadd.f32 %v671, %v726
  %v743 = vadd.f32 %v672, %v726
  %v744 = vadd.f32 %v673, %v726
  %v745 = vadd.f32 %v674, %v726
  %v746 = vadd.f32 %v675, %v726
  %v747 = vadd.f32 %v676, %v726
  %v748 = vadd.f32 %v677, %v726
  %v749 = vadd.f32 %v678, %v726
  %v750 = vadd.f32 %v679, %v726
  %v751 = vadd.f32 %v680, %v726
  %v752 = vadd.f32 %v681, %v726
  %v753 = vadd.f32 %v682, %v726
  %v754 = vadd.f32 %v683, %v726
  %v755 = vadd.f32 %v684, %v726
  %v756 = vadd.f32 %v685, %v726
  %v757 = vadd.f32 %v686, %v726
  %v758 = vadd.f32 %v687, %v726
  %v759 = vadd.f32 %v688, %v726
  %v760 = vadd.f32 %v689, %v726
  %v761 = vadd.f32 %v690, %v726
  %v762 = vadd.f32 %v691, %v726
  %v763 = vadd.f32 %v692, %v726
  %v764 = vadd.f32 %v693, %v726
  %v765 = vadd.f32 %v694, %v726
  %v766 = vadd.f32 %v695, %v726
  %v767 = vadd.f32 %v696, %v726
  %v768 = vadd.f32 %v697, %v726
  %v769 = vadd.f32 %v698, %v726
  %v770 = vadd.f32 %v699, %v726
  %v771 = vadd.f32 %v700, %v726
  %v772 = vadd.f32 %v701, %v726
  %v773 = vadd.f32 %v702, %v726
  %v774 = vadd.f32 %v703, %v726
  %v775 = vadd.f32 %v704, %v726
  %v776 = vadd.f32 %v705, %v726
  %v777 = vadd.f32 %v706, %v726
  %v778 = vadd.f32 %v707, %v726
  %v779 = vadd.f32 %v708, %v726
  %v780 = vadd.f32 %v709, %v726
  %v781 = vadd.f32 %v710, %v726
  %v782 = vadd.f32 %v711, %v726
  %v783 = vadd.f32 %v712, %v726
  %v784 = vadd.f32 %v713, %v726
  %v785 = vadd.f32 %v714, %v726
  %v786 = vadd.f32 %v715, %v726
  %v787 = vadd.f32 %v716, %v726
  %v788 = vadd.f32 %v717, %v726
  %v789 = vadd.f32 %v718, %v726
  %v790 = vadd.f32 %v719, %v726
  %v791 = vadd.f32 %v720, %v726
  %v792 = vsub.f32 0.0, %v728
  %v793 = vsub.f32 0.0, %v729
  %v794 = vsub.f32 0.0, %v730
  %v795 = vsub.f32 0.0, %v731
  %v796 = vsub.f32 0.0, %v732
  %v797 = vsub.f32 0.0, %v733
  %v798 = vsub.f32 0.0, %v734
  %v799 = vsub.f32 0.0, %v735
  %v800 = vsub.f32 0.0, %v736
  %v801 = vsub.f32 0.0, %v737
  %v802 = vsub.f32 0.0, %v738
  %v803 = vsub.f32 0.0, %v739
  %v804 = vsub.f32 0.0, %v740
  %v805 = vsub.f32 0.0, %v741
  %v806 = vsub.f32 0.0, %v742
  %v807 = vsub.f32 0.0, %v743
  %v808 = vsub.f32 0.0, %v744
  %v809 = vsub.f32 0.0, %v745
  %v810 = vsub.f32 0.0, %v746
  %v811 = vsub.f32 0.0, %v747
  %v812 = vsub.f32 0.0, %v748
  %v813 = vsub.f32 0.0, %v749
  %v814 = vsub.f32 0.0, %v750
  %v815 = vsub.f32 0.0, %v751
  %v816 = vsub.f32 0.0, %v752
  %v817 = vsub.f32 0.0, %v753
  %v818 = vsub.f32 0.0, %v754
  %v819 = vsub.f32 0.0, %v755
  %v820 = vsub.f32 0.0, %v756
  %v821 = vsub.f32 0.0, %v757
  %v822 = vsub.f32 0.0, %v758
  %v823 = vsub.f32 0.0, %v759
  %v824 = vsub.f32 0.0, %v760
  %v825 = vsub.f32 0.0, %v761
  %v826 = vsub.f32 0.0, %v762
  %v827 = vsub.f32 0.0, %v763
  %v828 = vsub.f32 0.0, %v764
  %v829 = vsub.f32 0.0, %v765
  %v830 = vsub.f32 0.0, %v766
  %v831 = vsub.f32 0.0, %v767
  %v832 = vsub.f32 0.0, %v768
  %v833 = vsub.f32 0.0, %v769
  %v834 = vsub.f32 0.0, %v770
  %v835 = vsub.f32 0.0, %v771
  %v836 = vsub.f32 0.0, %v772
  %v837 = vsub.f32 0.0, %v773
  %v838 = vsub.f32 0.0, %v774
  %v839 = vsub.f32 0.0, %v775
  %v840 = vsub.f32 0.0, %v776
  %v841 = vsub.f32 0.0, %v777
  %v842 = vsub.f32 0.0, %v778
  %v843 = vsub.f32 0.0, %v779
  %v844 = vsub.f32 0.0, %v780
  %v845 = vsub.f32 0.0, %v781
  %v846 = vsub.f32 0.0, %v782
  %v847 = vsub.f32 0.0, %v783
  %v848 = vsub.f32 0.0, %v784
  %v849 = vsub.f32 0.0, %v785
  %v850 = vsub.f32 0.0, %v786
  %v851 = vsub.f32 0.0, %v787
  %v852 = vsub.f32 0.0, %v788
  %v853 = vsub.f32 0.0, %v789
  %v854 = vsub.f32 0.0, %v790
  %v855 = vsub.f32 0.0, %v791
  %v856 = vmul.f32 %v792, 1.442695
  %v857 = vpow.pop %v856
  %v858 = vmul.f32 %v793, 1.442695
  %v859 = vpow.pop %v858
  %v860 = vmul.f32 %v794, 1.442695
  %v861 = vpow.pop %v860
  %v862 = vmul.f32 %v795, 1.442695
  %v863 = vpow.pop %v862
  %v864 = vmul.f32 %v796, 1.442695
  %v865 = vpow.pop %v864
  %v866 = vmul.f32 %v797, 1.442695
  %v867 = vpow.pop %v866
  %v868 = vmul.f32 %v798, 1.442695
  %v869 = vpow.pop %v868
  %v870 = vmul.f32 %v799, 1.442695
  %v871 = vpow.pop %v870
  %v872 = vmul.f32 %v800, 1.442695
  %v873 = vpow.pop %v872
  %v874 = vmul.f32 %v801, 1.442695
  %v875 = vpow.pop %v874
  %v876 = vmul.f32 %v802, 1.442695
  %v877 = vpow.pop %v876
  %v878 = vmul.f32 %v803, 1.442695
  %v879 = vpow.pop %v878
  %v880 = vmul.f32 %v804, 1.442695
  %v881 = vpow.pop %v880
  %v882 = vmul.f32 %v805, 1.442695
  %v883 = vpow.pop %v882
  %v884 = vmul.f32 %v806, 1.442695
  %v885 = vpow.pop %v884
  %v886 = vmul.f32 %v807, 1.442695
  %v887 = vpow.pop %v886
  %v888 = vmul.f32 %v808, 1.442695
  %v889 = vpow.pop %v888
  %v890 = vmul.f32 %v809, 1.442695
  %v891 = vpow.pop %v890
  %v892 = vmul.f32 %v810, 1.442695
  %v893 = vpow.pop %v892
  %v894 = vmul.f32 %v811, 1.442695
  %v895 = vpow.pop %v894
  %v896 = vmul.f32 %v812, 1.442695
  %v897 = vpow.pop %v896
  %v898 = vmul.f32 %v813, 1.442695
  %v899 = vpow.pop %v898
  %v900 = vmul.f32 %v814, 1.442695
  %v901 = vpow.pop %v900
  %v902 = vmul.f32 %v815, 1.442695
  %v903 = vpow.pop %v902
  %v904 = vmul.f32 %v816, 1.442695
  %v905 = vpow.pop %v904
  %v906 = vmul.f32 %v817, 1.442695
  %v907 = vpow.pop %v906
  %v908 = vmul.f32 %v818, 1.442695
  %v909 = vpow.pop %v908
  %v910 = vmul.f32 %v819, 1.442695
  %v911 = vpow.pop %v910
  %v912 = vmul.f32 %v820, 1.442695
  %v913 = vpow.pop %v912
  %v914 = vmul.f32 %v821, 1.442695
  %v915 = vpow.pop %v914
  %v916 = vmul.f32 %v822, 1.442695
  %v917 = vpow.pop %v916
  %v918 = vmul.f32 %v823, 1.442695
  %v919 = vpow.pop %v918
  %v920 = vmul.f32 %v824, 1.442695
  %v921 = vpow.pop %v920
  %v922 = vmul.f32 %v825, 1.442695
  %v923 = vpow.pop %v922
  %v924 = vmul.f32 %v826, 1.442695
  %v925 = vpow.pop %v924
  %v926 = vmul.f32 %v827, 1.442695
  %v927 = vpow.pop %v926
  %v928 = vmul.f32 %v828, 1.442695
  %v929 = vpow.pop %v928
  %v930 = vmul.f32 %v829, 1.442695
  %v931 = vpow.pop %v930
  %v932 = vmul.f32 %v830, 1.442695
  %v933 = vpow.pop %v932
  %v934 = vmul.f32 %v831, 1.442695
  %v935 = vpow.pop %v934
  %v936 = vmul.f32 %v832, 1.442695
  %v937 = vpow.pop %v936
  %v938 = vmul.f32 %v833, 1.442695
  %v939 = vpow.pop %v938
  %v940 = vmul.f32 %v834, 1.442695
  %v941 = vpow.pop %v940
  %v942 = vmul.f32 %v835, 1.442695
  %v943 = vpow.pop %v942
  %v944 = vmul.f32 %v836, 1.442695
  %v945 = vpow.pop %v944
  %v946 = vmul.f32 %v837, 1.442695
  %v947 = vpow.pop %v946
  %v948 = vmul.f32 %v838, 1.442695
  %v949 = vpow.pop %v948
  %v950 = vmul.f32 %v839, 1.442695
  %v951 = vpow.pop %v950
  %v952 = vmul.f32 %v840, 1.442695
  %v953 = vpow.pop %v952
  %v954 = vmul.f32 %v841, 1.442695
  %v955 = vpow.pop %v954
  %v956 = vmul.f32 %v842, 1.442695
  %v957 = vpow.pop %v956
  %v958 = vmul.f32 %v843, 1.442695
  %v959 = vpow.pop %v958
  %v960 = vmul.f32 %v844, 1.442695
  %v961 = vpow.pop %v960
  %v962 = vmul.f32 %v845, 1.442695
  %v963 = vpow.pop %v962
  %v964 = vmul.f32 %v846, 1.442695
  %v965 = vpow.pop %v964
  %v966 = vmul.f32 %v847, 1.442695
  %v967 = vpow.pop %v966
  %v968 = vmul.f32 %v848, 1.442695
  %v969 = vpow.pop %v968
  %v970 = vmul.f32 %v849, 1.442695
  %v971 = vpow.pop %v970
  %v972 = vmul.f32 %v850, 1.442695
  %v973 = vpow.pop %v972
  %v974 = vmul.f32 %v851, 1.442695
  %v975 = vpow.pop %v974
  %v976 = vmul.f32 %v852, 1.442695
  %v977 = vpow.pop %v976
  %v978 = vmul.f32 %v853, 1.442695
  %v979 = vpow.pop %v978
  %v980 = vmul.f32 %v854, 1.442695
  %v981 = vpow.pop %v980
  %v982 = vmul.f32 %v855, 1.442695
  %v983 = vpow.pop %v982
  %v984 = vadd.f32 %v857, 1.0
  %v985 = vadd.f32 %v859, 1.0
  %v986 = vadd.f32 %v861, 1.0
  %v987 = vadd.f32 %v863, 1.0
  %v988 = vadd.f32 %v865, 1.0
  %v989 = vadd.f32 %v867, 1.0
  %v990 = vadd.f32 %v869, 1.0
  %v991 = vadd.f32 %v871, 1.0
  %v992 = vadd.f32 %v873, 1.0
  %v993 = vadd.f32 %v875, 1.0
  %v994 = vadd.f32 %v877, 1.0
  %v995 = vadd.f32 %v879, 1.0
  %v996 = vadd.f32 %v881, 1.0
  %v997 = vadd.f32 %v883, 1.0
  %v998 = vadd.f32 %v885, 1.0
  %v999 = vadd.f32 %v887, 1.0
  %v1000 = vadd.f32 %v889, 1.0
  %v1001 = vadd.f32 %v891, 1.0
  %v1002 = vadd.f32 %v893, 1.0
  %v1003 = vadd.f32 %v895, 1.0
  %v1004 = vadd.f32 %v897, 1.0
  %v1005 = vadd.f32 %v899, 1.0
  %v1006 = vadd.f32 %v901, 1.0
  %v1007 = vadd.f32 %v903, 1.0
  %v1008 = vadd.f32 %v905, 1.0
  %v1009 = vadd.f32 %v907, 1.0
  %v1010 = vadd.f32 %v909, 1.0
  %v1011 = vadd.f32 %v911, 1.0
  %v1012 = vadd.f32 %v913, 1.0
  %v1013 = vadd.f32 %v915, 1.0
  %v1014 = vadd.f32 %v917, 1.0
  %v1015 = vadd.f32 %v919, 1.0
  %v1016 = vadd.f32 %v921, 1.0
  %v1017 = vadd.f32 %v923, 1.0
  %v1018 = vadd.f32 %v925, 1.0
  %v1019 = vadd.f32 %v927, 1.0
  %v1020 = vadd.f32 %v929, 1.0
  %v1021 = vadd.f32 %v931, 1.0
  %v1022 = vadd.f32 %v933, 1.0
  %v1023 = vadd.f32 %v935, 1.0
  %v1024 = vadd.f32 %v937, 1.0
  %v1025 = vadd.f32 %v939, 1.0
  %v1026 = vadd.f32 %v941, 1.0
  %v1027 = vadd.f32 %v943, 1.0
  %v1028 = vadd.f32 %v945, 1.0
  %v1029 = vadd.f32 %v947, 1.0
  %v1030 = vadd.f32 %v949, 1.0
  %v1031 = vadd.f32 %v951, 1.0
  %v1032 = vadd.f32 %v953, 1.0
  %v1033 = vadd.f32 %v955, 1.0
  %v1034 = vadd.f32 %v957, 1.0
  %v1035 = vadd.f32 %v959, 1.0
  %v1036 = vadd.f32 %v961, 1.0
  %v1037 = vadd.f32 %v963, 1.0
  %v1038 = vadd.f32 %v965, 1.0
  %v1039 = vadd.f32 %v967, 1.0
  %v1040 = vadd.f32 %v969, 1.0
  %v1041 = vadd.f32 %v971, 1.0
  %v1042 = vadd.f32 %v973, 1.0
  %v1043 = vadd.f32 %v975, 1.0
  %v1044 = vadd.f32 %v977, 1.0
  %v1045 = vadd.f32 %v979, 1.0
  %v1046 = vadd.f32 %v981, 1.0
  %v1047 = vadd.f32 %v983, 1.0
  %v1048 = vrcp.pop %v984
  %v1049 = vrcp.pop %v985
  %v1050 = vrcp.pop %v986
  %v1051 = vrcp.pop %v987
  %v1052 = vrcp.pop %v988
  %v1053 = vrcp.pop %v989
  %v1054 = vrcp.pop %v990
  %v1055 = vrcp.pop %v991
  %v1056 = vrcp.pop %v992
  %v1057 = vrcp.pop %v993
  %v1058 = vrcp.pop %v994
  %v1059 = vrcp.pop %v995
  %v1060 = vrcp.pop %v996
  %v1061 = vrcp.pop %v997
  %v1062 = vrcp.pop %v998
  %v1063 = vrcp.pop %v999
  %v1064 = vrcp.pop %v1000
  %v1065 = vrcp.pop %v1001
  %v1066 = vrcp.pop %v1002
  %v1067 = vrcp.pop %v1003
  %v1068 = vrcp.pop %v1004
  %v1069 = vrcp.pop %v1005
  %v1070 = vrcp.pop %v1006
  %v1071 = vrcp.pop %v1007
  %v1072 = vrcp.pop %v1008
  %v1073 = vrcp.pop %v1009
  %v1074 = vrcp.pop %v1010
  %v1075 = vrcp.pop %v1011
  %v1076 = vrcp.pop %v1012
  %v1077 = vrcp.pop %v1013
  %v1078 = vrcp.pop %v1014
  %v1079 = vrcp.pop %v1015
  %v1080 = vrcp.pop %v1016
  %v1081 = vrcp.pop %v1017
  %v1082 = vrcp.pop %v1018
  %v1083 = vrcp.pop %v1019
  %v1084 = vrcp.pop %v1020
  %v1085 = vrcp.pop %v1021
  %v1086 = vrcp.pop %v1022
  %v1087 = vrcp.pop %v1023
  %v1088 = vrcp.pop %v1024
  %v1089 = vrcp.pop %v1025
  %v1090 = vrcp.pop %v1026
  %v1091 = vrcp.pop %v1027
  %v1092 = vrcp.pop %v1028
  %v1093 = vrcp.pop %v1029
  %v1094 = vrcp.pop %v1030
  %v1095 = vrcp.pop %v1031
  %v1096 = vrcp.pop %v1032
  %v1097 = vrcp.pop %v1033
  %v1098 = vrcp.pop %v1034
  %v1099 = vrcp.pop %v1035
  %v1100 = vrcp.pop %v1036
  %v1101 = vrcp.pop %v1037
  %v1102 = vrcp.pop %v1038
  %v1103 = vrcp.pop %v1039
  %v1104 = vrcp.pop %v1040
  %v1105 = vrcp.pop %v1041
  %v1106 = vrcp.pop %v1042
  %v1107 = vrcp.pop %v1043
  %v1108 = vrcp.pop %v1044
  %v1109 = vrcp.pop %v1045
  %v1110 = vrcp.pop %v1046
  %v1111 = vrcp.pop %v1047
  %v1112 = vmul.f32 %v728, %v1048
  %v1113 = vmul.f32 %v729, %v1049
  %v1114 = vmul.f32 %v730, %v1050
  %v1115 = vmul.f32 %v731, %v1051
  %v1116 = vmul.f32 %v732, %v1052
  %v1117 = vmul.f32 %v733, %v1053
  %v1118 = vmul.f32 %v734, %v1054
  %v1119 = vmul.f32 %v735, %v1055
  %v1120 = vmul.f32 %v736, %v1056
  %v1121 = vmul.f32 %v737, %v1057
  %v1122 = vmul.f32 %v738, %v1058
  %v1123 = vmul.f32 %v739, %v1059
  %v1124 = vmul.f32 %v740, %v1060
  %v1125 = vmul.f32 %v741, %v1061
  %v1126 = vmul.f32 %v742, %v1062
  %v1127 = vmul.f32 %v743, %v1063
  %v1128 = vmul.f32 %v744, %v1064
  %v1129 = vmul.f32 %v745, %v1065
  %v1130 = vmul.f32 %v746, %v1066
  %v1131 = vmul.f32 %v747, %v1067
  %v1132 = vmul.f32 %v748, %v1068
  %v1133 = vmul.f32 %v749, %v1069
  %v1134 = vmul.f32 %v750, %v1070
  %v1135 = vmul.f32 %v751, %v1071
  %v1136 = vmul.f32 %v752, %v1072
  %v1137 = vmul.f32 %v753, %v1073
  %v1138 = vmul.f32 %v754, %v1074
  %v1139 = vmul.f32 %v755, %v1075
  %v1140 = vmul.f32 %v756, %v1076
  %v1141 = vmul.f32 %v757, %v1077
  %v1142 = vmul.f32 %v758, %v1078
  %v1143 = vmul.f32 %v759, %v1079
  %v1144 = vmul.f32 %v760, %v1080
  %v1145 = vmul.f32 %v761, %v1081
  %v1146 = vmul.f32 %v762, %v1082
  %v1147 = vmul.f32 %v763, %v1083
  %v1148 = vmul.f32 %v764, %v1084
  %v1149 = vmul.f32 %v765, %v1085
  %v1150 = vmul.f32 %v766, %v1086
  %v1151 = vmul.f32 %v767, %v1087
  %v1152 = vmul.f32 %v768, %v1088
  %v1153 = vmul.f32 %v769, %v1089
  %v1154 = vmul.f32 %v770, %v1090
  %v1155 = vmul.f32 %v771, %v1091
  %v1156 = vmul.f32 %v772, %v1092
  %v1157 = vmul.f32 %v773, %v1093
  %v1158 = vmul.f32 %v774, %v1094
  %v1159 = vmul.f32 %v775, %v1095
  %v1160 = vmul.f32 %v776, %v1096
  %v1161 = vmul.f32 %v777, %v1097
  %v1162 = vmul.f32 %v778, %v1098
  %v1163 = vmul.f32 %v779, %v1099
  %v1164 = vmul.f32 %v780, %v1100
  %v1165 = vmul.f32 %v781, %v1101
  %v1166 = vmul.f32 %v782, %v1102
  %v1167 = vmul.f32 %v783, %v1103
  %v1168 = vmul.f32 %v784, %v1104
  %v1169 = vmul.f32 %v785, %v1105
  %v1170 = vmul.f32 %v786, %v1106
  %v1171 = vmul.f32 %v787, %v1107
  %v1172 = vmul.f32 %v788, %v1108
  %v1173 = vmul.f32 %v789, %v1109
  %v1174 = vmul.f32 %v790, %v1110
  %v1175 = vmul.f32 %v791, %v1111
  %v1176 = vpack.c.bf16 %v1113, %v1112
  %v1177 = vpack.c.bf16 %v1115, %v1114
  %v1178 = vpack.c.bf16 %v1117, %v1116
  %v1179 = vpack.c.bf16 %v1119, %v1118
  %v1180 = vpack.c.bf16 %v1121, %v1120
  %v1181 = vpack.c.bf16 %v1123, %v1122
  %v1182 = vpack.c.bf16 %v1125, %v1124
  %v1183 = vpack.c.bf16 %v1127, %v1126
  %v1184 = vpack.c.bf16 %v1129, %v1128
  %v1185 = vpack.c.bf16 %v1131, %v1130
  %v1186 = vpack.c.bf16 %v1133, %v1132
  %v1187 = vpack.c.bf16 %v1135, %v1134
  %v1188 = vpack.c.bf16 %v1137, %v1136
  %v1189 = vpack.c.bf16 %v1139, %v1138
  %v1190 = vpack.c.bf16 %v1141, %v1140
  %v1191 = vpack.c.bf16 %v1143, %v1142
  %v1192 = vpack.c.bf16 %v1145, %v1144
  %v1193 = vpack.c.bf16 %v1147, %v1146
  %v1194 = vpack.c.bf16 %v1149, %v1148
  %v1195 = vpack.c.bf16 %v1151, %v1150
  %v1196 = vpack.c.bf16 %v1153, %v1152
  %v1197 = vpack.c.bf16 %v1155, %v1154
  %v1198 = vpack.c.bf16 %v1157, %v1156
  %v1199 = vpack.c.bf16 %v1159, %v1158
  %v1200 = vpack.c.bf16 %v1161, %v1160
  %v1201 = vpack.c.bf16 %v1163, %v1162
  %v1202 = vpack.c.bf16 %v1165, %v1164
  %v1203 = vpack.c.bf16 %v1167, %v1166
  %v1204 = vpack.c.bf16 %v1169, %v1168
  %v1205 = vpack.c.bf16 %v1171, %v1170
  %v1206 = vpack.c.bf16 %v1173, %v1172
  %v1207 = vpack.c.bf16 %v1175, %v1174
  %v1240 = vunpack.c.l.b16 %v1176
  %v1241 = vunpack.c.h.b16 %v1176
  %v1242 = vunpack.c.l.b16 %v1177
  %v1243 = vunpack.c.h.b16 %v1177
  %v1244 = vunpack.c.l.b16 %v1178
  %v1245 = vunpack.c.h.b16 %v1178
  %v1246 = vunpack.c.l.b16 %v1179
  %v1247 = vunpack.c.h.b16 %v1179
  %v1248 = vunpack.c.l.b16 %v1180
  %v1249 = vunpack.c.h.b16 %v1180
  %v1250 = vunpack.c.l.b16 %v1181
  %v1251 = vunpack.c.h.b16 %v1181
  %v1252 = vunpack.c.l.b16 %v1182
  %v1253 = vunpack.c.h.b16 %v1182
  %v1254 = vunpack.c.l.b16 %v1183
  %v1255 = vunpack.c.h.b16 %v1183
  %v1256 = vunpack.c.l.b16 %v1184
  %v1257 = vunpack.c.h.b16 %v1184
  %v1258 = vunpack.c.l.b16 %v1185
  %v1259 = vunpack.c.h.b16 %v1185
  %v1260 = vunpack.c.l.b16 %v1186
  %v1261 = vunpack.c.h.b16 %v1186
  %v1262 = vunpack.c.l.b16 %v1187
  %v1263 = vunpack.c.h.b16 %v1187
  %v1264 = vunpack.c.l.b16 %v1188
  %v1265 = vunpack.c.h.b16 %v1188
  %v1266 = vunpack.c.l.b16 %v1189
  %v1267 = vunpack.c.h.b16 %v1189
  %v1268 = vunpack.c.l.b16 %v1190
  %v1269 = vunpack.c.h.b16 %v1190
  %v1270 = vunpack.c.l.b16 %v1191
  %v1271 = vunpack.c.h.b16 %v1191
  %v1272 = vunpack.c.l.b16 %v1192
  %v1273 = vunpack.c.h.b16 %v1192
  %v1274 = vunpack.c.l.b16 %v1193
  %v1275 = vunpack.c.h.b16 %v1193
  %v1276 = vunpack.c.l.b16 %v1194
  %v1277 = vunpack.c.h.b16 %v1194
  %v1278 = vunpack.c.l.b16 %v1195
  %v1279 = vunpack.c.h.b16 %v1195
  %v1280 = vunpack.c.l.b16 %v1196
  %v1281 = vunpack.c.h.b16 %v1196
  %v1282 = vunpack.c.l.b16 %v1197
  %v1283 = vunpack.c.h.b16 %v1197
  %v1284 = vunpack.c.l.b16 %v1198
  %v1285 = vunpack.c.h.b16 %v1198
  %v1286 = vunpack.c.l.b16 %v1199
  %v1287 = vunpack.c.h.b16 %v1199
  %v1288 = vunpack.c.l.b16 %v1200
  %v1289 = vunpack.c.h.b16 %v1200
  %v1290 = vunpack.c.l.b16 %v1201
  %v1291 = vunpack.c.h.b16 %v1201
  %v1292 = vunpack.c.l.b16 %v1202
  %v1293 = vunpack.c.h.b16 %v1202
  %v1294 = vunpack.c.l.b16 %v1203
  %v1295 = vunpack.c.h.b16 %v1203
  %v1296 = vunpack.c.l.b16 %v1204
  %v1297 = vunpack.c.h.b16 %v1204
  %v1298 = vunpack.c.l.b16 %v1205
  %v1299 = vunpack.c.h.b16 %v1205
  %v1300 = vunpack.c.l.b16 %v1206
  %v1301 = vunpack.c.h.b16 %v1206
  %v1302 = vunpack.c.l.b16 %v1207
  %v1303 = vunpack.c.h.b16 %v1207
  %v1304 = vpack.c.b16 %v1240, %v1240
  %v1305 = vpack.c.b16 %v1241, %v1241
  %v1306 = vpack.c.b16 %v1242, %v1242
  %v1307 = vpack.c.b16 %v1243, %v1243
  %v1308 = vpack.c.b16 %v1244, %v1244
  %v1309 = vpack.c.b16 %v1245, %v1245
  %v1310 = vpack.c.b16 %v1246, %v1246
  %v1311 = vpack.c.b16 %v1247, %v1247
  %v1312 = vpack.c.b16 %v1248, %v1248
  %v1313 = vpack.c.b16 %v1249, %v1249
  %v1314 = vpack.c.b16 %v1250, %v1250
  %v1315 = vpack.c.b16 %v1251, %v1251
  %v1316 = vpack.c.b16 %v1252, %v1252
  %v1317 = vpack.c.b16 %v1253, %v1253
  %v1318 = vpack.c.b16 %v1254, %v1254
  %v1319 = vpack.c.b16 %v1255, %v1255
  %v1320 = vpack.c.b16 %v1256, %v1256
  %v1321 = vpack.c.b16 %v1257, %v1257
  %v1322 = vpack.c.b16 %v1258, %v1258
  %v1323 = vpack.c.b16 %v1259, %v1259
  %v1324 = vpack.c.b16 %v1260, %v1260
  %v1325 = vpack.c.b16 %v1261, %v1261
  %v1326 = vpack.c.b16 %v1262, %v1262
  %v1327 = vpack.c.b16 %v1263, %v1263
  %v1328 = vpack.c.b16 %v1264, %v1264
  %v1329 = vpack.c.b16 %v1265, %v1265
  %v1330 = vpack.c.b16 %v1266, %v1266
  %v1331 = vpack.c.b16 %v1267, %v1267
  %v1332 = vpack.c.b16 %v1268, %v1268
  %v1333 = vpack.c.b16 %v1269, %v1269
  %v1334 = vpack.c.b16 %v1270, %v1270
  %v1335 = vpack.c.b16 %v1271, %v1271
  %v1336 = vpack.c.b16 %v1272, %v1272
  %v1337 = vpack.c.b16 %v1273, %v1273
  %v1338 = vpack.c.b16 %v1274, %v1274
  %v1339 = vpack.c.b16 %v1275, %v1275
  %v1340 = vpack.c.b16 %v1276, %v1276
  %v1341 = vpack.c.b16 %v1277, %v1277
  %v1342 = vpack.c.b16 %v1278, %v1278
  %v1343 = vpack.c.b16 %v1279, %v1279
  %v1344 = vpack.c.b16 %v1280, %v1280
  %v1345 = vpack.c.b16 %v1281, %v1281
  %v1346 = vpack.c.b16 %v1282, %v1282
  %v1347 = vpack.c.b16 %v1283, %v1283
  %v1348 = vpack.c.b16 %v1284, %v1284
  %v1349 = vpack.c.b16 %v1285, %v1285
  %v1350 = vpack.c.b16 %v1286, %v1286
  %v1351 = vpack.c.b16 %v1287, %v1287
  %v1352 = vpack.c.b16 %v1288, %v1288
  %v1353 = vpack.c.b16 %v1289, %v1289
  %v1354 = vpack.c.b16 %v1290, %v1290
  %v1355 = vpack.c.b16 %v1291, %v1291
  %v1356 = vpack.c.b16 %v1292, %v1292
  %v1357 = vpack.c.b16 %v1293, %v1293
  %v1358 = vpack.c.b16 %v1294, %v1294
  %v1359 = vpack.c.b16 %v1295, %v1295
  %v1360 = vpack.c.b16 %v1296, %v1296
  %v1361 = vpack.c.b16 %v1297, %v1297
  %v1362 = vpack.c.b16 %v1298, %v1298
  %v1363 = vpack.c.b16 %v1299, %v1299
  %v1364 = vpack.c.b16 %v1300, %v1300
  %v1365 = vpack.c.b16 %v1301, %v1301
  %v1366 = vpack.c.b16 %v1302, %v1302
  %v1367 = vpack.c.b16 %v1303, %v1303
  %vm1432 = vcmask 322560
  %1433 = vst.msk [vmem:[%s4] sm:$0xf] %vm1432, %v1304
  %1434 = vst.msk [vmem:[%s4 + $0x4] sm:$0xf] %vm1432, %v1305
  %1435 = vst.msk [vmem:[%s4 + $0x8] sm:$0xf] %vm1432, %v1306
  %1436 = vst.msk [vmem:[%s4 + $0xc] sm:$0xf] %vm1432, %v1307
  %1437 = vst.msk [vmem:[%s4 + $0x10] sm:$0xf] %vm1432, %v1308
  %1438 = vst.msk [vmem:[%s4 + $0x14] sm:$0xf] %vm1432, %v1309
  %1439 = vst.msk [vmem:[%s4 + $0x18] sm:$0xf] %vm1432, %v1310
  %1440 = vst.msk [vmem:[%s4 + $0x1c] sm:$0xf] %vm1432, %v1311
  %1441 = vst.msk [vmem:[%s4 + $0x20] sm:$0xf] %vm1432, %v1312
  %1442 = vst.msk [vmem:[%s4 + $0x24] sm:$0xf] %vm1432, %v1313
  %1443 = vst.msk [vmem:[%s4 + $0x28] sm:$0xf] %vm1432, %v1314
  %1444 = vst.msk [vmem:[%s4 + $0x2c] sm:$0xf] %vm1432, %v1315
  %1445 = vst.msk [vmem:[%s4 + $0x30] sm:$0xf] %vm1432, %v1316
  %1446 = vst.msk [vmem:[%s4 + $0x34] sm:$0xf] %vm1432, %v1317
  %1447 = vst.msk [vmem:[%s4 + $0x38] sm:$0xf] %vm1432, %v1318
  %1448 = vst.msk [vmem:[%s4 + $0x3c] sm:$0xf] %vm1432, %v1319
  %1449 = vst.msk [vmem:[%s4 + $0x40] sm:$0xf] %vm1432, %v1320
  %1450 = vst.msk [vmem:[%s4 + $0x44] sm:$0xf] %vm1432, %v1321
  %1451 = vst.msk [vmem:[%s4 + $0x48] sm:$0xf] %vm1432, %v1322
  %1452 = vst.msk [vmem:[%s4 + $0x4c] sm:$0xf] %vm1432, %v1323
  %1453 = vst.msk [vmem:[%s4 + $0x50] sm:$0xf] %vm1432, %v1324
  %1454 = vst.msk [vmem:[%s4 + $0x54] sm:$0xf] %vm1432, %v1325
  %1455 = vst.msk [vmem:[%s4 + $0x58] sm:$0xf] %vm1432, %v1326
  %1456 = vst.msk [vmem:[%s4 + $0x5c] sm:$0xf] %vm1432, %v1327
  %1457 = vst.msk [vmem:[%s4 + $0x60] sm:$0xf] %vm1432, %v1328
  %1458 = vst.msk [vmem:[%s4 + $0x64] sm:$0xf] %vm1432, %v1329
  %1459 = vst.msk [vmem:[%s4 + $0x68] sm:$0xf] %vm1432, %v1330
  %1460 = vst.msk [vmem:[%s4 + $0x6c] sm:$0xf] %vm1432, %v1331
  %1461 = vst.msk [vmem:[%s4 + $0x70] sm:$0xf] %vm1432, %v1332
  %1462 = vst.msk [vmem:[%s4 + $0x74] sm:$0xf] %vm1432, %v1333
  %1463 = vst.msk [vmem:[%s4 + $0x78] sm:$0xf] %vm1432, %v1334
  %1464 = vst.msk [vmem:[%s4 + $0x7c] sm:$0xf] %vm1432, %v1335
  %1465 = vst.msk [vmem:[%s4 + $0x80] sm:$0xf] %vm1432, %v1336
  %1466 = vst.msk [vmem:[%s4 + $0x84] sm:$0xf] %vm1432, %v1337
  %1467 = vst.msk [vmem:[%s4 + $0x88] sm:$0xf] %vm1432, %v1338
  %1468 = vst.msk [vmem:[%s4 + $0x8c] sm:$0xf] %vm1432, %v1339
  %1469 = vst.msk [vmem:[%s4 + $0x90] sm:$0xf] %vm1432, %v1340
  %1470 = vst.msk [vmem:[%s4 + $0x94] sm:$0xf] %vm1432, %v1341
  %1471 = vst.msk [vmem:[%s4 + $0x98] sm:$0xf] %vm1432, %v1342
  %1472 = vst.msk [vmem:[%s4 + $0x9c] sm:$0xf] %vm1432, %v1343
  %1473 = vst.msk [vmem:[%s4 + $0xa0] sm:$0xf] %vm1432, %v1344
  %1474 = vst.msk [vmem:[%s4 + $0xa4] sm:$0xf] %vm1432, %v1345
  %1475 = vst.msk [vmem:[%s4 + $0xa8] sm:$0xf] %vm1432, %v1346
  %1476 = vst.msk [vmem:[%s4 + $0xac] sm:$0xf] %vm1432, %v1347
  %1477 = vst.msk [vmem:[%s4 + $0xb0] sm:$0xf] %vm1432, %v1348
  %1478 = vst.msk [vmem:[%s4 + $0xb4] sm:$0xf] %vm1432, %v1349
  %1479 = vst.msk [vmem:[%s4 + $0xb8] sm:$0xf] %vm1432, %v1350
  %1480 = vst.msk [vmem:[%s4 + $0xbc] sm:$0xf] %vm1432, %v1351
  %1481 = vst.msk [vmem:[%s4 + $0xc0] sm:$0xf] %vm1432, %v1352
  %1482 = vst.msk [vmem:[%s4 + $0xc4] sm:$0xf] %vm1432, %v1353
  %1483 = vst.msk [vmem:[%s4 + $0xc8] sm:$0xf] %vm1432, %v1354
  %1484 = vst.msk [vmem:[%s4 + $0xcc] sm:$0xf] %vm1432, %v1355
  %1485 = vst.msk [vmem:[%s4 + $0xd0] sm:$0xf] %vm1432, %v1356
  %1486 = vst.msk [vmem:[%s4 + $0xd4] sm:$0xf] %vm1432, %v1357
  %1487 = vst.msk [vmem:[%s4 + $0xd8] sm:$0xf] %vm1432, %v1358
  %1488 = vst.msk [vmem:[%s4 + $0xdc] sm:$0xf] %vm1432, %v1359
  %1489 = vst.msk [vmem:[%s4 + $0xe0] sm:$0xf] %vm1432, %v1360
  %1490 = vst.msk [vmem:[%s4 + $0xe4] sm:$0xf] %vm1432, %v1361
  %1491 = vst.msk [vmem:[%s4 + $0xe8] sm:$0xf] %vm1432, %v1362
  %1492 = vst.msk [vmem:[%s4 + $0xec] sm:$0xf] %vm1432, %v1363
  %1493 = vst.msk [vmem:[%s4 + $0xf0] sm:$0xf] %vm1432, %v1364
  %1494 = vst.msk [vmem:[%s4 + $0xf4] sm:$0xf] %vm1432, %v1365
  %1495 = vst.msk [vmem:[%s4 + $0xf8] sm:$0xf] %vm1432, %v1366
  %1496 = vst.msk [vmem:[%s4 + $0xfc] sm:$0xf] %vm1432, %v1367
  // Predicated region
  $region18: #{tpu_custom_call.1} parent=0 // pred_check
    _
  $region19: #{tpu_custom_call.1} parent=0 // pred_check_branch
    %1498 = sbr.rel (0) target = $region21
  $region20: #{tpu_custom_call.1} parent=0 // pred_region
    _
  $region21: #{tpu_custom_call.1} parent=0 // pred_fallthru
    _
  // Predicated region
  $region22: #{tpu_custom_call.1} parent=0 // pred_check
    _
  $region23: #{tpu_custom_call.1} parent=0 // pred_check_branch
    %1500 = sbr.rel (0) target = $region25
  $region24: #{tpu_custom_call.1} parent=0 // pred_region
    _
  $region25: #{tpu_custom_call.1} parent=0 // pred_fallthru
    _

</llo_original>
